<compile_context>
chip_gen: v7x
topology: tpu7x:2x2x1
jax: 0.10.0
libtpu: 0.0.40
codegen_flags: <defaults>
</compile_context>

<pallas_src>
import math

import jax
import jax.numpy as jnp
from jax.experimental import pallas as pl
from jax.experimental.pallas import tpu as pltpu

# ----------------------------- configuration -------------------------------
Q_NDIM = 2                   # dof_ndim
ANGULAR_DIMS = (0,)          # angular_dims
HIDDEN = 32                  # hidden_size (small for the demo; module default 256)
NUM_LAYERS = 2               # num_layers
BATCH = 16

D_STATE = 2 * Q_NDIM                               # z width
IN_NET = 2 * Q_NDIM + len(ANGULAR_DIMS)            # CosSin output width
IN_CTRL = 1                                        # control_net input width
OUT_DIM = 2 * Q_NDIM
MAX_ROWS_PER_BLOCK = 1024                          # batch tile at large batch

# set-difference order as in the reference CosSin (sorted for determinism)
NON_ANGULAR_DIMS = tuple(sorted(set(range(Q_NDIM)) - set(ANGULAR_DIMS)))


# ------------------------------ Pallas kernel -------------------------------
def controlnn_kernel(t_ref, z_ref, w1f_ref, w2s_ref, w3s_ref, brow_ref, bout_ref,
                     out_ref):
    z = z_ref[...]                                      # (BN, D_STATE) f32
    brow = brow_ref[...]                                # (5, HIDDEN)
    # brow rows: 0=b1, 1=cb1, 2=b2, 3=cb2, 4=cw1 (row of the K=1 weight)

    # ---- self.net with CosSin folded into the first-layer weights ----
    # feat @ W1 == cos(z) @ Wc + sin(z) @ Ws + z @ Wz  (Wc/Ws/Wz built host-side)
    zc = jnp.cos(z)
    zs = jnp.sin(z)
    pre = (
        jnp.dot(zc, w1f_ref[0], preferred_element_type=jnp.float32)
        + jnp.dot(zs, w1f_ref[1], preferred_element_type=jnp.float32)
        + jnp.dot(z, w1f_ref[2], preferred_element_type=jnp.float32)
        + brow[0:1, :]
    )
    h = jnp.tanh(pre)
    h = jnp.tanh(
        jnp.dot(h, w2s_ref[0], preferred_element_type=jnp.float32) + brow[2:3, :]
    )
    dyn = jnp.dot(h, w3s_ref[0], preferred_element_type=jnp.float32)

    # ---- fused control policy: u = tanh(sum(z, -1) + t) ----
    t = t_ref[0]                                        # SMEM scalar
    u = jnp.tanh(jnp.sum(z, axis=-1, keepdims=True) + t)        # (BN, 1)

    # ---- self.control_net ----
    # first layer has K=1: outer product on the VPU, not the MXU
    c = jnp.tanh(u * brow[4:5, :] + brow[1:2, :])                # (BN, HIDDEN)
    c = jnp.tanh(
        jnp.dot(c, w2s_ref[1], preferred_element_type=jnp.float32) + brow[3:4, :]
    )
    ctrl = jnp.dot(c, w3s_ref[1], preferred_element_type=jnp.float32)

    # final biases of both heads were pre-summed into bout
    out_ref[...] = (dyn + ctrl + bout_ref[...]).astype(out_ref.dtype)


def controlnn_forward(t, z, packed_params):
    """dynamics = net(CosSin(z)) + control_net(control_policy(t, z)), fused."""
    n = z.shape[0]
    bn = n if n <= MAX_ROWS_PER_BLOCK else MAX_ROWS_PER_BLOCK
    assert n % bn == 0 and (bn == n or bn % 8 == 0)
    grid_len = n // bn
    w1f, w2s, w3s, brow, bout = packed_params

    t_arr = jnp.asarray(t, jnp.float32).reshape((1,))

    def full_spec(a):
        nd = a.ndim
        return pl.BlockSpec(a.shape, lambda i, _nd=nd: (0,) * _nd)

    return pl.pallas_call(
        controlnn_kernel,
        out_shape=jax.ShapeDtypeStruct((n, OUT_DIM), jnp.float32),
        grid=(grid_len,),
        in_specs=[
            pl.BlockSpec(memory_space=pltpu.MemorySpace.SMEM),      # t (scalar)
            pl.BlockSpec((bn, D_STATE), lambda i: (i, 0)),          # z
            full_spec(w1f), full_spec(w2s), full_spec(w3s),
            full_spec(brow), full_spec(bout),
        ],
        out_specs=pl.BlockSpec((bn, OUT_DIM), lambda i: (i, 0)),
        compiler_params=pltpu.CompilerParams(
            # Keep a tiny problem on one TensorCore; shard only when the grid
            # actually has enough independent tiles.
            dimension_semantics=("arbitrary",) if grid_len <= 2 else ("parallel",),
        ),
    )(t_arr, z, w1f, w2s, w3s, brow, bout)


# ------------------------- parameter initialization -------------------------
def _linear_params(key, fan_in, fan_out):
    """Orthogonal weight (stored as (in,out)) + PyTorch-default uniform bias."""
    kw, kb = jax.random.split(key)
    w = jax.nn.initializers.orthogonal()(kw, (fan_in, fan_out), jnp.float32)
    bound = 1.0 / math.sqrt(fan_in)
    b = jax.random.uniform(kb, (1, fan_out), jnp.float32, -bound, bound)
    return w, b


def init_params(key):
    keys = jax.random.split(key, 6)
    # self.net : IN_NET -> HIDDEN -> HIDDEN -> OUT_DIM
    w1, b1 = _linear_params(keys[0], IN_NET, HIDDEN)
    w2, b2 = _linear_params(keys[1], HIDDEN, HIDDEN)
    w3, b3 = _linear_params(keys[2], HIDDEN, OUT_DIM)
    # self.control_net : 1 -> HIDDEN -> HIDDEN -> OUT_DIM
    cw1, cb1 = _linear_params(keys[3], IN_CTRL, HIDDEN)
    cw2, cb2 = _linear_params(keys[4], HIDDEN, HIDDEN)
    cw3, cb3 = _linear_params(keys[5], HIDDEN, OUT_DIM)
    return (w1, b1, w2, b2, w3, b3, cw1, cb1, cw2, cb2, cw3, cb3)


def pack_params(params):
    """Fold CosSin into W1 and pack 12 tensors into 5 kernel inputs (done once)."""
    (w1, b1, w2, b2, w3, b3, cw1, cb1, cw2, cb2, cw3, cb3) = params
    na = len(ANGULAR_DIMS)
    wc = jnp.zeros((D_STATE, HIDDEN), jnp.float32)
    ws = jnp.zeros((D_STATE, HIDDEN), jnp.float32)
    wz = jnp.zeros((D_STATE, HIDDEN), jnp.float32)
    # feat layout (CosSin, only_q=False): [cos(q_ang), sin(q_ang), q_nonang, qdot]
    for j, d in enumerate(ANGULAR_DIMS):
        wc = wc.at[d].set(w1[j])
        ws = ws.at[d].set(w1[na + j])
    for j, d in enumerate(NON_ANGULAR_DIMS):
        wz = wz.at[d].set(w1[2 * na + j])
    wz = wz.at[Q_NDIM:].set(w1[2 * na + len(NON_ANGULAR_DIMS):])   # qdot pass-through

    w1f = jnp.stack([wc, ws, wz])                    # (3, D_STATE, HIDDEN)
    w2s = jnp.stack([w2, cw2])                       # (2, HIDDEN, HIDDEN)
    w3s = jnp.stack([w3, cw3])                       # (2, HIDDEN, OUT_DIM)
    brow = jnp.concatenate([b1, cb1, b2, cb2, cw1], axis=0)   # (5, HIDDEN)
    bout = b3 + cb3                                  # (1, OUT_DIM)
    return (w1f, w2s, w3s, brow, bout)


# ------------------------------- control policy -----------------------------
def control_policy(t, z):
    # Synthetic deterministic control policy (user-supplied in the original
    # module).  The SAME expression is fused inside the Pallas kernel.
    return jnp.tanh(jnp.sum(z, axis=-1, keepdims=True) + t)


# --------------------------- plain-JAX reference ----------------------------
def reference_forward(t, z, params):
    (w1, b1, w2, b2, w3, b3, cw1, cb1, cw2, cb2, cw3, cb3) = params
    q, other = z[:, :Q_NDIM], z[:, Q_NDIM:]
    parts = []
    if ANGULAR_DIMS:
        q_ang = q[:, list(ANGULAR_DIMS)]
        parts += [jnp.cos(q_ang), jnp.sin(q_ang)]
    if NON_ANGULAR_DIMS:
        parts.append(q[:, list(NON_ANGULAR_DIMS)])
    parts.append(other)
    feat = jnp.concatenate(parts, axis=-1)
    h = jnp.tanh(feat @ w1 + b1)
    h = jnp.tanh(h @ w2 + b2)
    dyn = h @ w3 + b3
    u = control_policy(t, z)
    c = jnp.tanh(u @ cw1 + cb1)
    c = jnp.tanh(c @ cw2 + cb2)
    ctrl = c @ cw3 + cb3
    return dyn + ctrl


# ----------------------------------- main ------------------------------------
if __name__ == "__main__":
    key = jax.random.PRNGKey(0)
    kp, kz = jax.random.split(key)

    raw_params = init_params(kp)
    packed = pack_params(raw_params)
    z = jax.random.normal(kz, (BATCH, D_STATE), jnp.float32)
    t = jnp.float32(0.25)                       # scalar time

    out = controlnn_forward(t, z, packed)
    out = jax.block_until_ready(out)

    ref = reference_forward(t, z, raw_params)
    assert out.shape == (BATCH, OUT_DIM)
    assert jnp.allclose(out, ref, atol=1e-5, rtol=1e-5), float(
        jnp.max(jnp.abs(out - ref))
    )

    # TODO(synk): odeint-based `integrate`/`_integrate` and SWAG utilities are
    # host-side orchestration outside the forward pass and are not kernelized.
    print("KERNEL_OK")
</pallas_src>

<mosaic_0001>
module attributes {stable_mosaic.version = 11 : i64} {
  func.func @controlnn_kernel(%arg0: i32, %arg1: memref<1xf32, #tpu.memory_space<smem>>, %arg2: memref<16x4xf32, #tpu.memory_space<vmem>>, %arg3: memref<3x4x32xf32, #tpu.memory_space<vmem>>, %arg4: memref<2x32x32xf32, #tpu.memory_space<vmem>>, %arg5: memref<2x32x4xf32, #tpu.memory_space<vmem>>, %arg6: memref<5x32xf32, #tpu.memory_space<vmem>>, %arg7: memref<1x4xf32, #tpu.memory_space<vmem>>, %arg8: memref<16x4xf32, #tpu.memory_space<vmem>>) attributes {dimension_semantics = [#tpu.dimension_semantics<arbitrary>], iteration_bounds = array<i64: 1>, scalar_prefetch = 0 : i64, scratch_operands = 0 : i64, tpu.core_type = #tpu.core_type<tc>, window_params = [{transform_indices = @transform_0, window_bounds = array<i64: 1>}, {transform_indices = @transform_1, window_bounds = array<i64: 16, 4>}, {pipeline_mode = #tpu.pipeline_mode<synchronous>, transform_indices = @transform_2, window_bounds = array<i64: 3, 4, 32>}, {pipeline_mode = #tpu.pipeline_mode<synchronous>, transform_indices = @transform_3, window_bounds = array<i64: 2, 32, 32>}, {pipeline_mode = #tpu.pipeline_mode<synchronous>, transform_indices = @transform_4, window_bounds = array<i64: 2, 32, 4>}, {pipeline_mode = #tpu.pipeline_mode<synchronous>, transform_indices = @transform_5, window_bounds = array<i64: 5, 32>}, {pipeline_mode = #tpu.pipeline_mode<synchronous>, transform_indices = @transform_6, window_bounds = array<i64: 1, 4>}, {transform_indices = @transform_7, window_bounds = array<i64: 16, 4>}]} {
    %c0 = arith.constant 0 : index
    %c0_0 = arith.constant 0 : index
    %0 = vector.load %arg2[%c0, %c0_0] : memref<16x4xf32, #tpu.memory_space<vmem>>, vector<16x4xf32>
    %c0_1 = arith.constant 0 : index
    %c0_2 = arith.constant 0 : index
    %1 = vector.load %arg6[%c0_1, %c0_2] : memref<5x32xf32, #tpu.memory_space<vmem>>, vector<5x32xf32>
    %2 = math.cos %0 : vector<16x4xf32>
    %3 = math.sin %0 : vector<16x4xf32>
    %c0_3 = arith.constant 0 : index
    %c0_4 = arith.constant 0 : index
    %c0_5 = arith.constant 0 : index
    %4 = vector.load %arg3[%c0_3, %c0_4, %c0_5] : memref<3x4x32xf32, #tpu.memory_space<vmem>>, vector<1x4x32xf32>
    %5 = vector.shape_cast %4 : vector<1x4x32xf32> to vector<4x32xf32>
    %cst = arith.constant dense<0.000000e+00> : vector<16x32xf32>
    %6 = tpu.matmul %2, %5, %cst {dimension_numbers = #tpu.dot_dimension_numbers<[1], [0], [0], [1], [0, 0, 1, 1], [], []>} : vector<16x4xf32>, vector<4x32xf32>, vector<16x32xf32> -> vector<16x32xf32>
    %c1 = arith.constant 1 : index
    %c0_6 = arith.constant 0 : index
    %c0_7 = arith.constant 0 : index
    %7 = vector.load %arg3[%c1, %c0_6, %c0_7] : memref<3x4x32xf32, #tpu.memory_space<vmem>>, vector<1x4x32xf32>
    %8 = vector.shape_cast %7 : vector<1x4x32xf32> to vector<4x32xf32>
    %cst_8 = arith.constant dense<0.000000e+00> : vector<16x32xf32>
    %9 = tpu.matmul %3, %8, %cst_8 {dimension_numbers = #tpu.dot_dimension_numbers<[1], [0], [0], [1], [0, 0, 1, 1], [], []>} : vector<16x4xf32>, vector<4x32xf32>, vector<16x32xf32> -> vector<16x32xf32>
    %10 = arith.addf %6, %9 : vector<16x32xf32>
    %c2 = arith.constant 2 : index
    %c0_9 = arith.constant 0 : index
    %c0_10 = arith.constant 0 : index
    %11 = vector.load %arg3[%c2, %c0_9, %c0_10] : memref<3x4x32xf32, #tpu.memory_space<vmem>>, vector<1x4x32xf32>
    %12 = vector.shape_cast %11 : vector<1x4x32xf32> to vector<4x32xf32>
    %cst_11 = arith.constant dense<0.000000e+00> : vector<16x32xf32>
    %13 = tpu.matmul %0, %12, %cst_11 {dimension_numbers = #tpu.dot_dimension_numbers<[1], [0], [0], [1], [0, 0, 1, 1], [], []>} : vector<16x4xf32>, vector<4x32xf32>, vector<16x32xf32> -> vector<16x32xf32>
    %14 = arith.addf %10, %13 : vector<16x32xf32>
    %15 = vector.extract_strided_slice %1 {offsets = [0, 0], sizes = [1, 32], strides = [1, 1]} : vector<5x32xf32> to vector<1x32xf32>
    %16 = vector.broadcast %15 : vector<1x32xf32> to vector<16x32xf32>
    %17 = arith.addf %14, %16 : vector<16x32xf32>
    %18 = math.tanh %17 : vector<16x32xf32>
    %c0_12 = arith.constant 0 : index
    %c0_13 = arith.constant 0 : index
    %c0_14 = arith.constant 0 : index
    %19 = vector.load %arg4[%c0_12, %c0_13, %c0_14] : memref<2x32x32xf32, #tpu.memory_space<vmem>>, vector<1x32x32xf32>
    %20 = vector.shape_cast %19 : vector<1x32x32xf32> to vector<32x32xf32>
    %cst_15 = arith.constant dense<0.000000e+00> : vector<16x32xf32>
    %21 = tpu.matmul %18, %20, %cst_15 {dimension_numbers = #tpu.dot_dimension_numbers<[1], [0], [0], [1], [0, 0, 1, 1], [], []>} : vector<16x32xf32>, vector<32x32xf32>, vector<16x32xf32> -> vector<16x32xf32>
    %22 = vector.extract_strided_slice %1 {offsets = [2, 0], sizes = [1, 32], strides = [1, 1]} : vector<5x32xf32> to vector<1x32xf32>
    %23 = vector.broadcast %22 : vector<1x32xf32> to vector<16x32xf32>
    %24 = arith.addf %21, %23 : vector<16x32xf32>
    %25 = math.tanh %24 : vector<16x32xf32>
    %c0_16 = arith.constant 0 : index
    %c0_17 = arith.constant 0 : index
    %c0_18 = arith.constant 0 : index
    %26 = vector.load %arg5[%c0_16, %c0_17, %c0_18] : memref<2x32x4xf32, #tpu.memory_space<vmem>>, vector<1x32x4xf32>
    %27 = vector.shape_cast %26 : vector<1x32x4xf32> to vector<32x4xf32>
    %cst_19 = arith.constant dense<0.000000e+00> : vector<16x4xf32>
    %28 = tpu.matmul %25, %27, %cst_19 {dimension_numbers = #tpu.dot_dimension_numbers<[1], [0], [0], [1], [0, 0, 1, 1], [], []>} : vector<16x32xf32>, vector<32x4xf32>, vector<16x4xf32> -> vector<16x4xf32>
    %c0_20 = arith.constant 0 : index
    %29 = memref.load %arg1[%c0_20] : memref<1xf32, #tpu.memory_space<smem>>
    %cst_21 = arith.constant dense<0.000000e+00> : vector<16xf32>
    %30 = vector.multi_reduction <add>, %0, %cst_21 [1] : vector<16x4xf32> to vector<16xf32>
    %31 = vector.shape_cast %30 : vector<16xf32> to vector<16x1xf32>
    %32 = vector.broadcast %29 : f32 to vector<16x1xf32>
    %33 = arith.addf %31, %32 : vector<16x1xf32>
    %34 = math.tanh %33 : vector<16x1xf32>
    %35 = vector.extract_strided_slice %1 {offsets = [4, 0], sizes = [1, 32], strides = [1, 1]} : vector<5x32xf32> to vector<1x32xf32>
    %36 = vector.broadcast %34 : vector<16x1xf32> to vector<16x32xf32>
    %37 = vector.broadcast %35 : vector<1x32xf32> to vector<16x32xf32>
    %38 = arith.mulf %36, %37 : vector<16x32xf32>
    %39 = vector.extract_strided_slice %1 {offsets = [1, 0], sizes = [1, 32], strides = [1, 1]} : vector<5x32xf32> to vector<1x32xf32>
    %40 = vector.broadcast %39 : vector<1x32xf32> to vector<16x32xf32>
    %41 = arith.addf %38, %40 : vector<16x32xf32>
    %42 = math.tanh %41 : vector<16x32xf32>
    %c1_22 = arith.constant 1 : index
    %c0_23 = arith.constant 0 : index
    %c0_24 = arith.constant 0 : index
    %43 = vector.load %arg4[%c1_22, %c0_23, %c0_24] : memref<2x32x32xf32, #tpu.memory_space<vmem>>, vector<1x32x32xf32>
    %44 = vector.shape_cast %43 : vector<1x32x32xf32> to vector<32x32xf32>
    %cst_25 = arith.constant dense<0.000000e+00> : vector<16x32xf32>
    %45 = tpu.matmul %42, %44, %cst_25 {dimension_numbers = #tpu.dot_dimension_numbers<[1], [0], [0], [1], [0, 0, 1, 1], [], []>} : vector<16x32xf32>, vector<32x32xf32>, vector<16x32xf32> -> vector<16x32xf32>
    %46 = vector.extract_strided_slice %1 {offsets = [3, 0], sizes = [1, 32], strides = [1, 1]} : vector<5x32xf32> to vector<1x32xf32>
    %47 = vector.broadcast %46 : vector<1x32xf32> to vector<16x32xf32>
    %48 = arith.addf %45, %47 : vector<16x32xf32>
    %49 = math.tanh %48 : vector<16x32xf32>
    %c1_26 = arith.constant 1 : index
    %c0_27 = arith.constant 0 : index
    %c0_28 = arith.constant 0 : index
    %50 = vector.load %arg5[%c1_26, %c0_27, %c0_28] : memref<2x32x4xf32, #tpu.memory_space<vmem>>, vector<1x32x4xf32>
    %51 = vector.shape_cast %50 : vector<1x32x4xf32> to vector<32x4xf32>
    %cst_29 = arith.constant dense<0.000000e+00> : vector<16x4xf32>
    %52 = tpu.matmul %49, %51, %cst_29 {dimension_numbers = #tpu.dot_dimension_numbers<[1], [0], [0], [1], [0, 0, 1, 1], [], []>} : vector<16x32xf32>, vector<32x4xf32>, vector<16x4xf32> -> vector<16x4xf32>
    %53 = arith.addf %28, %52 : vector<16x4xf32>
    %c0_30 = arith.constant 0 : index
    %c0_31 = arith.constant 0 : index
    %54 = vector.load %arg7[%c0_30, %c0_31] : memref<1x4xf32, #tpu.memory_space<vmem>>, vector<1x4xf32>
    %55 = vector.broadcast %54 : vector<1x4xf32> to vector<16x4xf32>
    %56 = arith.addf %53, %55 : vector<16x4xf32>
    %c0_32 = arith.constant 0 : index
    %c0_33 = arith.constant 0 : index
    %57 = vector.load %arg8[%c0_32, %c0_33] : memref<16x4xf32, #tpu.memory_space<vmem>>, vector<16x4xf32>
    tpu.vector_store %arg8[%c0_32, %c0_33], %56 {strides = array<i32>} : memref<16x4xf32, #tpu.memory_space<vmem>>, vector<16x4xf32>,
    return
  }
  func.func @transform_0(%arg0: i32) -> i32 {
    %c0_i32 = arith.constant 0 : i32
    %c0_i32_0 = arith.constant 0 : i32
    return %c0_i32 : i32
  }
  func.func @transform_1(%arg0: i32) -> (i32, i32) {
    %c0_i32 = arith.constant 0 : i32
    %c0_i32_0 = arith.constant 0 : i32
    return %arg0, %c0_i32 : i32, i32
  }
  func.func @transform_2(%arg0: i32) -> (i32, i32, i32) {
    %c0_i32 = arith.constant 0 : i32
    %c0_i32_0 = arith.constant 0 : i32
    %c0_i32_1 = arith.constant 0 : i32
    %c0_i32_2 = arith.constant 0 : i32
    return %c0_i32, %c0_i32_0, %c0_i32_1 : i32, i32, i32
  }
  func.func @transform_3(%arg0: i32) -> (i32, i32, i32) {
    %c0_i32 = arith.constant 0 : i32
    %c0_i32_0 = arith.constant 0 : i32
    %c0_i32_1 = arith.constant 0 : i32
    %c0_i32_2 = arith.constant 0 : i32
    return %c0_i32, %c0_i32_0, %c0_i32_1 : i32, i32, i32
  }
  func.func @transform_4(%arg0: i32) -> (i32, i32, i32) {
    %c0_i32 = arith.constant 0 : i32
    %c0_i32_0 = arith.constant 0 : i32
    %c0_i32_1 = arith.constant 0 : i32
    %c0_i32_2 = arith.constant 0 : i32
    return %c0_i32, %c0_i32_0, %c0_i32_1 : i32, i32, i32
  }
  func.func @transform_5(%arg0: i32) -> (i32, i32) {
    %c0_i32 = arith.constant 0 : i32
    %c0_i32_0 = arith.constant 0 : i32
    %c0_i32_1 = arith.constant 0 : i32
    return %c0_i32, %c0_i32_0 : i32, i32
  }
  func.func @transform_6(%arg0: i32) -> (i32, i32) {
    %c0_i32 = arith.constant 0 : i32
    %c0_i32_0 = arith.constant 0 : i32
    %c0_i32_1 = arith.constant 0 : i32
    return %c0_i32, %c0_i32_0 : i32, i32
  }
  func.func @transform_7(%arg0: i32) -> (i32, i32) {
    %c0_i32 = arith.constant 0 : i32
    %c0_i32_0 = arith.constant 0 : i32
    return %arg0, %c0_i32 : i32, i32
  }
}

</mosaic_0001>

<llo_original>
// kernel: tpu_custom_call.1
$region0: #{tpu_custom_call.1}
  #allocation0 [shape = 'u32[]', space=smem, size = 0x4, offset = 0x4, fixed_abs, tag = 'smem constant byte address 0x4 - core index']
  #allocation1 [shape = 'u32[144,128]{1,0:T(1,128)}', space=vmem, size = 0x12000, scoped, tag = 'internal scratch']
  #allocation2 [shape = 'f32[1]{0:T(128)S(6)}', space=smem, size = 0x200, scoped, tag = 'scoped memory for tpu_custom_call.1']
  %s0 = inlined_call_operand.<no memory space> [shape: f32[1], index: 0, kind: input, shape index: {}]
  %s1 = inlined_call_operand.vmem [shape: f32[16,4], index: 1, kind: input, shape index: {}]
  %s2 = inlined_call_operand.vmem [shape: f32[3,4,32], index: 2, kind: input, shape index: {}]
  %s3 = inlined_call_operand.vmem [shape: f32[2,32,32], index: 3, kind: input, shape index: {}]
  %s4 = inlined_call_operand.vmem [shape: f32[2,32,4], index: 4, kind: input, shape index: {}]
  %s5 = inlined_call_operand.vmem [shape: f32[5,32], index: 5, kind: input, shape index: {}]
  %s6 = inlined_call_operand.vmem [shape: f32[1,4], index: 6, kind: input, shape index: {}]
  %s7 = inlined_call_operand.vmem [shape: f32[16,4], index: 7, kind: output, shape index: {}]
  %s8 = sld [smem:[#allocation0]]
  $region38: #{tpu_custom_call.1} parent=0
    _
  %s10 = ssub.s32 1, %s8
  %s11 = scalar_select 0, %s10, %s8
  %12 = sst [smem:[#allocation2]] %s0
  // Predicated region
  $region2: #{tpu_custom_call.1} parent=0 // pred_check
    _
  $region3: #{tpu_custom_call.1} parent=0 // pred_check_branch
    %14 = sbr.rel (0) target = $region5
  $region4: #{tpu_custom_call.1} parent=0 // pred_region
    _
  $region5: #{tpu_custom_call.1} parent=0 // pred_fallthru
    _
  // Predicated region
  $region6: #{tpu_custom_call.1} parent=0 // pred_check
    _
  $region7: #{tpu_custom_call.1} parent=0 // pred_check_branch
    %16 = sbr.rel (0) target = $region9
  $region8: #{tpu_custom_call.1} parent=0 // pred_region
    _
  $region9: #{tpu_custom_call.1} parent=0 // pred_fallthru
    _
  // Predicated region
  $region10: #{tpu_custom_call.1} parent=0 // pred_check
    _
  $region11: #{tpu_custom_call.1} parent=0 // pred_check_branch
    %18 = sbr.rel (0) target = $region13
  $region12: #{tpu_custom_call.1} parent=0 // pred_region
    _
  $region13: #{tpu_custom_call.1} parent=0 // pred_fallthru
    _
  // Predicated region
  $region14: #{tpu_custom_call.1} parent=0 // pred_check
    _
  $region15: #{tpu_custom_call.1} parent=0 // pred_check_branch
    %20 = sbr.rel (0) target = $region17
  $region16: #{tpu_custom_call.1} parent=0 // pred_region
    _
  $region17: #{tpu_custom_call.1} parent=0 // pred_fallthru
    _
  // Predicated region
  $region18: #{tpu_custom_call.1} parent=0 // pred_check
    _
  $region19: #{tpu_custom_call.1} parent=0 // pred_check_branch
    %22 = sbr.rel (0) target = $region21
  $region20: #{tpu_custom_call.1} parent=0 // pred_region
    _
  $region21: #{tpu_custom_call.1} parent=0 // pred_fallthru
    _
  // Predicated region
  $region22: #{tpu_custom_call.1} parent=0 // pred_check
    _
  $region23: #{tpu_custom_call.1} parent=0 // pred_check_branch
    %24 = sbr.rel (0) target = $region25
  $region24: #{tpu_custom_call.1} parent=0 // pred_region
    _
  $region25: #{tpu_custom_call.1} parent=0 // pred_fallthru
    _
  // Predicated region
  $region26: #{tpu_custom_call.1} parent=0 // pred_check
    _
  $region27: #{tpu_custom_call.1} parent=0 // pred_check_branch
    %26 = sbr.rel (0) target = $region29
  $region28: #{tpu_custom_call.1} parent=0 // pred_region
    _
  $region29: #{tpu_custom_call.1} parent=0 // pred_fallthru
    _
  %v27 = vld [vmem:[%s1] sm:$0xff]
  %v28 = vld [vmem:[%s1 + $0x8] sm:$0xff]
  %v29 = vld [vmem:[%s5] sm:$0x1f]
  %v30 = vand.u32 2147483647, %v27
  %vm31 = vcmp.le.f32.partialorder %v30, 0.7853982
  %vm32 = vcmp.lt.s32.totalorder %v27, 0
  %v33 = vand.u32 %v27, 2139095040
  %v34 = vshrl.u32 %v33, 23
  %v35 = vsub.s32 %v34, 127
  %v36 = vand.u32 2147483647, %v27
  %v37 = vand.u32 %v36, 8388607
  %v38 = vor.u32 %v37, 8388608
  %v39 = vsub.s32 0, %v38
  %v40 = vadd.s32 %v35, 1
  %vm41 = vcmp.gt.s32.totalorder %v40, 0
  %v42 = vsel %vm41, %v40, 0
  %v43 = vshrl.u32 %v42, 5
  %v44 = vand.u32 %v42, 31
  %v45 = vsub.s32 32, %v44
  %v46 = vshrl.u32 683565275, %v45
  %v47 = vshll.u32 683565275, %v44
  %v48 = vshrl.u32 2475754826, %v45
  %v49 = vor.u32 %v47, %v48
  %v50 = vshll.u32 2475754826, %v44
  %v51 = vshrl.u32 2131351028, %v45
  %v52 = vor.u32 %v50, %v51
  %v53 = vshll.u32 2131351028, %v44
  %v54 = vshrl.u32 2102212464, %v45
  %v55 = vor.u32 %v53, %v54
  %v56 = vshll.u32 2102212464, %v44
  %v57 = vshrl.u32 920167782, %v45
  %v58 = vor.u32 %v56, %v57
  %v59 = vshll.u32 920167782, %v44
  %v60 = vshrl.u32 1326507024, %v45
  %v61 = vor.u32 %v59, %v60
  %vm62 = vcmp.lt.s32.totalorder %v43, 1
  %vm63 = vcmp.lt.s32.totalorder %v43, 2
  %vm64 = vcmp.lt.s32.totalorder %v43, 3
  %vm65 = vcmp.lt.s32.totalorder %v43, 4
  %v66 = vsel %vm62, %v46, %v49
  %v67 = vsel %vm65, %v55, 2102212464
  %v68 = vsel %vm64, %v52, %v67
  %v69 = vsel %vm63, %v66, %v68
  %v70 = vsel %vm62, %v49, %v52
  %v71 = vsel %vm65, %v58, 920167782
  %v72 = vsel %vm64, %v55, %v71
  %v73 = vsel %vm63, %v70, %v72
  %v74 = vsel %vm62, %v52, %v55
  %v75 = vsel %vm65, %v61, 1326507024
  %v76 = vsel %vm64, %v58, %v75
  %v77 = vsel %vm63, %v74, %v76
  %v78 = vshll.u32 %v38, 8
  %v79 = vmul.u32.u64.compose %v78, %v77
  %v80 = vextract.low.u32 %v79
  %v81 = vextract.high.u32 %v79
  %v82 = vmul.u32.u64.compose %v78, %v73
  %v83 = vextract.low.u32 %v82
  %v84 = vextract.high.u32 %v82
  %v85 = vmul.u32 %v78, %v69
  %v86 = vadd.s32 %v81, %v83
  %vm87 = vc.u32 %v81, %v83
  %v88 = vadd.s32 %v84, 1
  %v89 = vsel %vm87, %v88, %v84
  %v90 = vadd.s32 %v85, %v89
  %v91 = vadd.s32 %v90, 536870912
  %v92 = vshrl.u32 %v91, 30
  %v93 = vshll.u32 %v92, 30
  %v94 = vsub.s32 %v90, %v93
  %vm95 = vcmp.lt.s32.totalorder %v94, 0
  %v96 = vsub.s32 0, %v94
  %v97 = vsel %vm95, %v96, %v94
  %v98 = vclz %v97
  %v99 = vsub.s32 %v98, 2
  %vm100 = vcmp.gt.s32.totalorder 0, %v99
  %v101 = vsel %vm100, 0, %v99
  %v102 = vsub.s32 32, %v101
  %v103 = vshll.u32 %v94, %v101
  %v104 = vshrl.u32 %v86, %v102
  %v105 = vor.u32 %v103, %v104
  %v106 = vsub.s32 4294967266, %v101
  %v107 = vadd.s32 %v106, 127
  %v108 = vshll.u32 %v107, 23
  %v109 = vor.u32 4788187, %v108
  %v110 = vand.u32 2147483647, %v109
  %v112 = vcvt.s32.f32 %v105
  %v113 = vmul.f32 %v112, %v110
  %v114 = vxor.u32 %v113, 2147483648
  %v115 = vsel %vm32, %v114, %v113
  %v116 = vsub.s32 4, %v92
  %v117 = vsel %vm32, %v116, %v92
  %v118 = vsel %vm31, %v27, %v115
  %v119 = vsel %vm31, 0, %v117
  %v120 = vcosq.f32.pop %v118
  %v121 = vsinq.f32.pop %v118
  %vm122 = vweird.f32 %v27
  %v123 = vand.u32 %v119, 3
  %vm124 = vcmp.lt.s32.totalorder %v123, 2
  %vm125 = vcmp.eq.s32.totalorder %v123, 0
  %v126 = vxor.u32 %v121, 2147483648
  %v127 = vsel %vm125, %v120, %v126
  %vm128 = vcmp.eq.s32.totalorder %v123, 2
  %v129 = vxor.u32 %v120, 2147483648
  %v130 = vsel %vm128, %v129, %v121
  %v131 = vsel %vm124, %v127, %v130
  %v132 = vsel %vm122, nan, %v131
  %v133 = vand.u32 2147483647, %v28
  %vm134 = vcmp.le.f32.partialorder %v133, 0.7853982
  %vm135 = vcmp.lt.s32.totalorder %v28, 0
  %v136 = vand.u32 %v28, 2139095040
  %v137 = vshrl.u32 %v136, 23
  %v138 = vsub.s32 %v137, 127
  %v139 = vand.u32 2147483647, %v28
  %v140 = vand.u32 %v139, 8388607
  %v141 = vor.u32 %v140, 8388608
  %v142 = vsub.s32 0, %v141
  %v143 = vadd.s32 %v138, 1
  %vm144 = vcmp.gt.s32.totalorder %v143, 0
  %v145 = vsel %vm144, %v143, 0
  %v146 = vshrl.u32 %v145, 5
  %v147 = vand.u32 %v145, 31
  %v148 = vsub.s32 32, %v147
  %v149 = vshrl.u32 683565275, %v148
  %v150 = vshll.u32 683565275, %v147
  %v151 = vshrl.u32 2475754826, %v148
  %v152 = vor.u32 %v150, %v151
  %v153 = vshll.u32 2475754826, %v147
  %v154 = vshrl.u32 2131351028, %v148
  %v155 = vor.u32 %v153, %v154
  %v156 = vshll.u32 2131351028, %v147
  %v157 = vshrl.u32 2102212464, %v148
  %v158 = vor.u32 %v156, %v157
  %v159 = vshll.u32 2102212464, %v147
  %v160 = vshrl.u32 920167782, %v148
  %v161 = vor.u32 %v159, %v160
  %v162 = vshll.u32 920167782, %v147
  %v163 = vshrl.u32 1326507024, %v148
  %v164 = vor.u32 %v162, %v163
  %vm165 = vcmp.lt.s32.totalorder %v146, 1
  %vm166 = vcmp.lt.s32.totalorder %v146, 2
  %vm167 = vcmp.lt.s32.totalorder %v146, 3
  %vm168 = vcmp.lt.s32.totalorder %v146, 4
  %v169 = vsel %vm165, %v149, %v152
  %v170 = vsel %vm168, %v158, 2102212464
  %v171 = vsel %vm167, %v155, %v170
  %v172 = vsel %vm166, %v169, %v171
  %v173 = vsel %vm165, %v152, %v155
  %v174 = vsel %vm168, %v161, 920167782
  %v175 = vsel %vm167, %v158, %v174
  %v176 = vsel %vm166, %v173, %v175
  %v177 = vsel %vm165, %v155, %v158
  %v178 = vsel %vm168, %v164, 1326507024
  %v179 = vsel %vm167, %v161, %v178
  %v180 = vsel %vm166, %v177, %v179
  %v181 = vshll.u32 %v141, 8
  %v182 = vmul.u32.u64.compose %v181, %v180
  %v183 = vextract.low.u32 %v182
  %v184 = vextract.high.u32 %v182
  %v185 = vmul.u32.u64.compose %v181, %v176
  %v186 = vextract.low.u32 %v185
  %v187 = vextract.high.u32 %v185
  %v188 = vmul.u32 %v181, %v172
  %v189 = vadd.s32 %v184, %v186
  %vm190 = vc.u32 %v184, %v186
  %v191 = vadd.s32 %v187, 1
  %v192 = vsel %vm190, %v191, %v187
  %v193 = vadd.s32 %v188, %v192
  %v194 = vadd.s32 %v193, 536870912
  %v195 = vshrl.u32 %v194, 30
  %v196 = vshll.u32 %v195, 30
  %v197 = vsub.s32 %v193, %v196
  %vm198 = vcmp.lt.s32.totalorder %v197, 0
  %v199 = vsub.s32 0, %v197
  %v200 = vsel %vm198, %v199, %v197
  %v201 = vclz %v200
  %v202 = vsub.s32 %v201, 2
  %vm203 = vcmp.gt.s32.totalorder 0, %v202
  %v204 = vsel %vm203, 0, %v202
  %v205 = vsub.s32 32, %v204
  %v206 = vshll.u32 %v197, %v204
  %v207 = vshrl.u32 %v189, %v205
  %v208 = vor.u32 %v206, %v207
  %v209 = vsub.s32 4294967266, %v204
  %v210 = vadd.s32 %v209, 127
  %v211 = vshll.u32 %v210, 23
  %v212 = vor.u32 4788187, %v211
  %v213 = vand.u32 2147483647, %v212
  %v215 = vcvt.s32.f32 %v208
  %v216 = vmul.f32 %v215, %v213
  %v217 = vxor.u32 %v216, 2147483648
  %v218 = vsel %vm135, %v217, %v216
  %v219 = vsub.s32 4, %v195
  %v220 = vsel %vm135, %v219, %v195
  %v221 = vsel %vm134, %v28, %v218
  %v222 = vsel %vm134, 0, %v220
  %v223 = vcosq.f32.pop %v221
  %v224 = vsinq.f32.pop %v221
  %vm225 = vweird.f32 %v28
  %v226 = vand.u32 %v222, 3
  %vm227 = vcmp.lt.s32.totalorder %v226, 2
  %vm228 = vcmp.eq.s32.totalorder %v226, 0
  %v229 = vxor.u32 %v224, 2147483648
  %v230 = vsel %vm228, %v223, %v229
  %vm231 = vcmp.eq.s32.totalorder %v226, 2
  %v232 = vxor.u32 %v223, 2147483648
  %v233 = vsel %vm231, %v232, %v224
  %v234 = vsel %vm227, %v230, %v233
  %v235 = vsel %vm225, nan, %v234
  %v236 = vand.u32 2147483647, %v27
  %vm237 = vcmp.le.f32.partialorder %v236, 0.7853982
  %vm238 = vcmp.lt.s32.totalorder %v27, 0
  %v239 = vand.u32 %v27, 2139095040
  %v240 = vshrl.u32 %v239, 23
  %v241 = vsub.s32 %v240, 127
  %v242 = vand.u32 2147483647, %v27
  %v243 = vand.u32 %v242, 8388607
  %v244 = vor.u32 %v243, 8388608
  %v245 = vsub.s32 0, %v244
  %v246 = vadd.s32 %v241, 1
  %vm247 = vcmp.gt.s32.totalorder %v246, 0
  %v248 = vsel %vm247, %v246, 0
  %v249 = vshrl.u32 %v248, 5
  %v250 = vand.u32 %v248, 31
  %v251 = vsub.s32 32, %v250
  %v252 = vshrl.u32 683565275, %v251
  %v253 = vshll.u32 683565275, %v250
  %v254 = vshrl.u32 2475754826, %v251
  %v255 = vor.u32 %v253, %v254
  %v256 = vshll.u32 2475754826, %v250
  %v257 = vshrl.u32 2131351028, %v251
  %v258 = vor.u32 %v256, %v257
  %v259 = vshll.u32 2131351028, %v250
  %v260 = vshrl.u32 2102212464, %v251
  %v261 = vor.u32 %v259, %v260
  %v262 = vshll.u32 2102212464, %v250
  %v263 = vshrl.u32 920167782, %v251
  %v264 = vor.u32 %v262, %v263
  %v265 = vshll.u32 920167782, %v250
  %v266 = vshrl.u32 1326507024, %v251
  %v267 = vor.u32 %v265, %v266
  %vm268 = vcmp.lt.s32.totalorder %v249, 1
  %vm269 = vcmp.lt.s32.totalorder %v249, 2
  %vm270 = vcmp.lt.s32.totalorder %v249, 3
  %vm271 = vcmp.lt.s32.totalorder %v249, 4
  %v272 = vsel %vm268, %v252, %v255
  %v273 = vsel %vm271, %v261, 2102212464
  %v274 = vsel %vm270, %v258, %v273
  %v275 = vsel %vm269, %v272, %v274
  %v276 = vsel %vm268, %v255, %v258
  %v277 = vsel %vm271, %v264, 920167782
  %v278 = vsel %vm270, %v261, %v277
  %v279 = vsel %vm269, %v276, %v278
  %v280 = vsel %vm268, %v258, %v261
  %v281 = vsel %vm271, %v267, 1326507024
  %v282 = vsel %vm270, %v264, %v281
  %v283 = vsel %vm269, %v280, %v282
  %v284 = vshll.u32 %v244, 8
  %v285 = vmul.u32.u64.compose %v284, %v283
  %v286 = vextract.low.u32 %v285
  %v287 = vextract.high.u32 %v285
  %v288 = vmul.u32.u64.compose %v284, %v279
  %v289 = vextract.low.u32 %v288
  %v290 = vextract.high.u32 %v288
  %v291 = vmul.u32 %v284, %v275
  %v292 = vadd.s32 %v287, %v289
  %vm293 = vc.u32 %v287, %v289
  %v294 = vadd.s32 %v290, 1
  %v295 = vsel %vm293, %v294, %v290
  %v296 = vadd.s32 %v291, %v295
  %v297 = vadd.s32 %v296, 536870912
  %v298 = vshrl.u32 %v297, 30
  %v299 = vshll.u32 %v298, 30
  %v300 = vsub.s32 %v296, %v299
  %vm301 = vcmp.lt.s32.totalorder %v300, 0
  %v302 = vsub.s32 0, %v300
  %v303 = vsel %vm301, %v302, %v300
  %v304 = vclz %v303
  %v305 = vsub.s32 %v304, 2
  %vm306 = vcmp.gt.s32.totalorder 0, %v305
  %v307 = vsel %vm306, 0, %v305
  %v308 = vsub.s32 32, %v307
  %v309 = vshll.u32 %v300, %v307
  %v310 = vshrl.u32 %v292, %v308
  %v311 = vor.u32 %v309, %v310
  %v312 = vsub.s32 4294967266, %v307
  %v313 = vadd.s32 %v312, 127
  %v314 = vshll.u32 %v313, 23
  %v315 = vor.u32 4788187, %v314
  %v316 = vand.u32 2147483647, %v315
  %v318 = vcvt.s32.f32 %v311
  %v319 = vmul.f32 %v318, %v316
  %v320 = vxor.u32 %v319, 2147483648
  %v321 = vsel %vm238, %v320, %v319
  %v322 = vsub.s32 4, %v298
  %v323 = vsel %vm238, %v322, %v298
  %v324 = vsel %vm237, %v27, %v321
  %v325 = vsel %vm237, 0, %v323
  %v326 = vcosq.f32.pop %v324
  %v327 = vsinq.f32.pop %v324
  %vm328 = vweird.f32 %v27
  %v329 = vadd.s32 %v325, 3
  %v330 = vand.u32 %v329, 3
  %vm331 = vcmp.lt.s32.totalorder %v330, 2
  %vm332 = vcmp.eq.s32.totalorder %v330, 0
  %v333 = vxor.u32 %v327, 2147483648
  %v334 = vsel %vm332, %v326, %v333
  %vm335 = vcmp.eq.s32.totalorder %v330, 2
  %v336 = vxor.u32 %v326, 2147483648
  %v337 = vsel %vm335, %v336, %v327
  %v338 = vsel %vm331, %v334, %v337
  %v339 = vsel %vm328, nan, %v338
  %v340 = vand.u32 2147483647, %v28
  %vm341 = vcmp.le.f32.partialorder %v340, 0.7853982
  %vm342 = vcmp.lt.s32.totalorder %v28, 0
  %v343 = vand.u32 %v28, 2139095040
  %v344 = vshrl.u32 %v343, 23
  %v345 = vsub.s32 %v344, 127
  %v346 = vand.u32 2147483647, %v28
  %v347 = vand.u32 %v346, 8388607
  %v348 = vor.u32 %v347, 8388608
  %v349 = vsub.s32 0, %v348
  %v350 = vadd.s32 %v345, 1
  %vm351 = vcmp.gt.s32.totalorder %v350, 0
  %v352 = vsel %vm351, %v350, 0
  %v353 = vshrl.u32 %v352, 5
  %v354 = vand.u32 %v352, 31
  %v355 = vsub.s32 32, %v354
  %v356 = vshrl.u32 683565275, %v355
  %v357 = vshll.u32 683565275, %v354
  %v358 = vshrl.u32 2475754826, %v355
  %v359 = vor.u32 %v357, %v358
  %v360 = vshll.u32 2475754826, %v354
  %v361 = vshrl.u32 2131351028, %v355
  %v362 = vor.u32 %v360, %v361
  %v363 = vshll.u32 2131351028, %v354
  %v364 = vshrl.u32 2102212464, %v355
  %v365 = vor.u32 %v363, %v364
  %v366 = vshll.u32 2102212464, %v354
  %v367 = vshrl.u32 920167782, %v355
  %v368 = vor.u32 %v366, %v367
  %v369 = vshll.u32 920167782, %v354
  %v370 = vshrl.u32 1326507024, %v355
  %v371 = vor.u32 %v369, %v370
  %vm372 = vcmp.lt.s32.totalorder %v353, 1
  %vm373 = vcmp.lt.s32.totalorder %v353, 2
  %vm374 = vcmp.lt.s32.totalorder %v353, 3
  %vm375 = vcmp.lt.s32.totalorder %v353, 4
  %v376 = vsel %vm372, %v356, %v359
  %v377 = vsel %vm375, %v365, 2102212464
  %v378 = vsel %vm374, %v362, %v377
  %v379 = vsel %vm373, %v376, %v378
  %v380 = vsel %vm372, %v359, %v362
  %v381 = vsel %vm375, %v368, 920167782
  %v382 = vsel %vm374, %v365, %v381
  %v383 = vsel %vm373, %v380, %v382
  %v384 = vsel %vm372, %v362, %v365
  %v385 = vsel %vm375, %v371, 1326507024
  %v386 = vsel %vm374, %v368, %v385
  %v387 = vsel %vm373, %v384, %v386
  %v388 = vshll.u32 %v348, 8
  %v389 = vmul.u32.u64.compose %v388, %v387
  %v390 = vextract.low.u32 %v389
  %v391 = vextract.high.u32 %v389
  %v392 = vmul.u32.u64.compose %v388, %v383
  %v393 = vextract.low.u32 %v392
  %v394 = vextract.high.u32 %v392
  %v395 = vmul.u32 %v388, %v379
  %v396 = vadd.s32 %v391, %v393
  %vm397 = vc.u32 %v391, %v393
  %v398 = vadd.s32 %v394, 1
  %v399 = vsel %vm397, %v398, %v394
  %v400 = vadd.s32 %v395, %v399
  %v401 = vadd.s32 %v400, 536870912
  %v402 = vshrl.u32 %v401, 30
  %v403 = vshll.u32 %v402, 30
  %v404 = vsub.s32 %v400, %v403
  %vm405 = vcmp.lt.s32.totalorder %v404, 0
  %v406 = vsub.s32 0, %v404
  %v407 = vsel %vm405, %v406, %v404
  %v408 = vclz %v407
  %v409 = vsub.s32 %v408, 2
  %vm410 = vcmp.gt.s32.totalorder 0, %v409
  %v411 = vsel %vm410, 0, %v409
  %v412 = vsub.s32 32, %v411
  %v413 = vshll.u32 %v404, %v411
  %v414 = vshrl.u32 %v396, %v412
  %v415 = vor.u32 %v413, %v414
  %v416 = vsub.s32 4294967266, %v411
  %v417 = vadd.s32 %v416, 127
  %v418 = vshll.u32 %v417, 23
  %v419 = vor.u32 4788187, %v418
  %v420 = vand.u32 2147483647, %v419
  %v422 = vcvt.s32.f32 %v415
  %v423 = vmul.f32 %v422, %v420
  %v424 = vxor.u32 %v423, 2147483648
  %v425 = vsel %vm342, %v424, %v423
  %v426 = vsub.s32 4, %v402
  %v427 = vsel %vm342, %v426, %v402
  %v428 = vsel %vm341, %v28, %v425
  %v429 = vsel %vm341, 0, %v427
  %v430 = vcosq.f32.pop %v428
  %v431 = vsinq.f32.pop %v428
  %vm432 = vweird.f32 %v28
  %v433 = vadd.s32 %v429, 3
  %v434 = vand.u32 %v433, 3
  %vm435 = vcmp.lt.s32.totalorder %v434, 2
  %vm436 = vcmp.eq.s32.totalorder %v434, 0
  %v437 = vxor.u32 %v431, 2147483648
  %v438 = vsel %vm436, %v430, %v437
  %vm439 = vcmp.eq.s32.totalorder %v434, 2
  %v440 = vxor.u32 %v430, 2147483648
  %v441 = vsel %vm439, %v440, %v431
  %v442 = vsel %vm435, %v438, %v441
  %v443 = vsel %vm432, nan, %v442
  %v444 = vld [vmem:[%s2] sm:$0xf]
  %s445 = scalar_lea.vmem %s2, 4
  %v446 = vld [vmem:[%s445] sm:$0xf]
  %vm447 = vcmask 31744
  %v449 = vsel %vm447, %v339, 0
  %v452 = vsel %vm447, %v443, 0
  %vm454 = vcmask 1043456
  %v456 = vsel %vm454, %v446, 0
  %458 = vmatprep.subr.mxu0 0.0
  %459 = vmatpush1.msra.mxu0 %v456
  %460 = vmatprep.subr.mxu0 0.0
  %461 = vmatpush1.msra.mxu0 0.0
  %462 = vmatprep.subr.mxu0 0.0
  %463 = vmatpush1.msra.mxu0 0.0
  %464 = vmatprep.subr.mxu0 0.0
  %465 = vmatpush1.msra.mxu0 0.0
  %466 = vmatprep.subr.mxu0 0.0
  %467 = vmatpush1.msra.mxu0 0.0
  %468 = vmatprep.subr.mxu0 0.0
  %469 = vmatpush1.msra.mxu0 0.0
  %470 = vmatprep.subr.mxu0 0.0
  %471 = vmatpush1.msra.mxu0 0.0
  %472 = vmatprep.subr.mxu0 0.0
  %473 = vmatpush1.msra.mxu0 0.0
  %474 = vmatprep.subr.mxu0 0.0
  %475 = vmatpush1.msra.mxu0 0.0
  %476 = vmatprep.subr.mxu0 0.0
  %477 = vmatpush1.msra.mxu0 0.0
  %478 = vmatprep.subr.mxu0 0.0
  %479 = vmatpush1.msra.mxu0 0.0
  %480 = vmatprep.subr.mxu0 0.0
  %481 = vmatpush1.msra.mxu0 0.0
  %482 = vmatprep.subr.mxu0 0.0
  %483 = vmatpush1.msra.mxu0 0.0
  %484 = vmatprep.subr.mxu0 0.0
  %485 = vmatpush1.msra.mxu0 0.0
  %486 = vmatprep.subr.mxu0 0.0
  %487 = vmatpush1.msra.mxu0 0.0
  %488 = vmatprep.subr.mxu0 0.0
  %489 = vmatpush1.msra.mxu0 0.0
  %490 = vmatprep.subr.mxu0 0.0
  %491 = vmatpush1.msra.mxu0 0.0
  %492 = vmatprep.subr.mxu0 0.0
  %493 = vmatpush1.msra.mxu0 0.0
  %494 = vmatprep.subr.mxu0 0.0
  %495 = vmatpush1.msra.mxu0 0.0
  %496 = vmatprep.subr.mxu0 0.0
  %497 = vmatpush1.msra.mxu0 0.0
  %498 = vmatprep.subr.mxu0 0.0
  %499 = vmatpush1.msra.mxu0 0.0
  %500 = vmatprep.subr.mxu0 0.0
  %501 = vmatpush1.msra.mxu0 0.0
  %502 = vmatprep.subr.mxu0 0.0
  %503 = vmatpush1.msra.mxu0 0.0
  %504 = vmatprep.subr.mxu0 0.0
  %505 = vmatpush1.msra.mxu0 0.0
  %506 = vmatprep.subr.mxu0 0.0
  %507 = vmatpush1.msra.mxu0 0.0
  %508 = vmatprep.subr.mxu0 0.0
  %509 = vmatpush1.msra.mxu0 0.0
  %510 = vmatprep.subr.mxu0 0.0
  %511 = vmatpush1.msra.mxu0 0.0
  %512 = vmatprep.subr.mxu0 0.0
  %513 = vmatpush1.msra.mxu0 0.0
  %514 = vmatprep.subr.mxu0 0.0
  %515 = vmatpush1.msra.mxu0 0.0
  %516 = vmatprep.subr.mxu0 0.0
  %517 = vmatpush1.msra.mxu0 0.0
  %518 = vmatprep.subr.mxu0 0.0
  %519 = vmatpush1.msra.mxu0 0.0
  %520 = vmatprep.subr.mxu0 0.0
  %521 = vmatpush1.msra.mxu0 0.0
  %522 = vmatprep.mubr.f32.mxu0 0.0
  %523 = vmatmul.mubr.f32.gmra.mrb[0].mxu0 %v449
  %v524 = vpop.f32.mrb[0].mxu0
  %v525 = vadd.f32 0.0, %v524
  %v526 = vpop.f32.mrb[0].mxu0
  %527 = vmatprep.mubr.f32.mxu0 0.0
  %528 = vmatmul.mubr.f32.gmra.mrb[0].mxu0 %v452
  %v529 = vpop.f32.mrb[0].mxu0
  %v530 = vadd.f32 0.0, %v529
  %v531 = vpop.f32.mrb[0].mxu0
  %532 = vdwg.mxu0
  %v534 = vsel %vm447, %v132, 0
  %v537 = vsel %vm447, %v235, 0
  %v540 = vsel %vm454, %v444, 0
  %542 = vmatprep.subr.mxu0 0.0
  %543 = vmatpush1.msra.mxu0 %v540
  %544 = vmatprep.subr.mxu0 0.0
  %545 = vmatpush1.msra.mxu0 0.0
  %546 = vmatprep.subr.mxu0 0.0
  %547 = vmatpush1.msra.mxu0 0.0
  %548 = vmatprep.subr.mxu0 0.0
  %549 = vmatpush1.msra.mxu0 0.0
  %550 = vmatprep.subr.mxu0 0.0
  %551 = vmatpush1.msra.mxu0 0.0
  %552 = vmatprep.subr.mxu0 0.0
  %553 = vmatpush1.msra.mxu0 0.0
  %554 = vmatprep.subr.mxu0 0.0
  %555 = vmatpush1.msra.mxu0 0.0
  %556 = vmatprep.subr.mxu0 0.0
  %557 = vmatpush1.msra.mxu0 0.0
  %558 = vmatprep.subr.mxu0 0.0
  %559 = vmatpush1.msra.mxu0 0.0
  %560 = vmatprep.subr.mxu0 0.0
  %561 = vmatpush1.msra.mxu0 0.0
  %562 = vmatprep.subr.mxu0 0.0
  %563 = vmatpush1.msra.mxu0 0.0
  %564 = vmatprep.subr.mxu0 0.0
  %565 = vmatpush1.msra.mxu0 0.0
  %566 = vmatprep.subr.mxu0 0.0
  %567 = vmatpush1.msra.mxu0 0.0
  %568 = vmatprep.subr.mxu0 0.0
  %569 = vmatpush1.msra.mxu0 0.0
  %570 = vmatprep.subr.mxu0 0.0
  %571 = vmatpush1.msra.mxu0 0.0
  %572 = vmatprep.subr.mxu0 0.0
  %573 = vmatpush1.msra.mxu0 0.0
  %574 = vmatprep.subr.mxu0 0.0
  %575 = vmatpush1.msra.mxu0 0.0
  %576 = vmatprep.subr.mxu0 0.0
  %577 = vmatpush1.msra.mxu0 0.0
  %578 = vmatprep.subr.mxu0 0.0
  %579 = vmatpush1.msra.mxu0 0.0
  %580 = vmatprep.subr.mxu0 0.0
  %581 = vmatpush1.msra.mxu0 0.0
  %582 = vmatprep.subr.mxu0 0.0
  %583 = vmatpush1.msra.mxu0 0.0
  %584 = vmatprep.subr.mxu0 0.0
  %585 = vmatpush1.msra.mxu0 0.0
  %586 = vmatprep.subr.mxu0 0.0
  %587 = vmatpush1.msra.mxu0 0.0
  %588 = vmatprep.subr.mxu0 0.0
  %589 = vmatpush1.msra.mxu0 0.0
  %590 = vmatprep.subr.mxu0 0.0
  %591 = vmatpush1.msra.mxu0 0.0
  %592 = vmatprep.subr.mxu0 0.0
  %593 = vmatpush1.msra.mxu0 0.0
  %594 = vmatprep.subr.mxu0 0.0
  %595 = vmatpush1.msra.mxu0 0.0
  %596 = vmatprep.subr.mxu0 0.0
  %597 = vmatpush1.msra.mxu0 0.0
  %598 = vmatprep.subr.mxu0 0.0
  %599 = vmatpush1.msra.mxu0 0.0
  %600 = vmatprep.subr.mxu0 0.0
  %601 = vmatpush1.msra.mxu0 0.0
  %602 = vmatprep.subr.mxu0 0.0
  %603 = vmatpush1.msra.mxu0 0.0
  %604 = vmatprep.subr.mxu0 0.0
  %605 = vmatpush1.msra.mxu0 0.0
  %606 = vmatprep.mubr.f32.mxu0 0.0
  %607 = vmatmul.mubr.f32.gmra.mrb[0].mxu0 %v534
  %v608 = vpop.f32.mrb[0].mxu0
  %v609 = vadd.f32 %v525, %v608
  %v610 = vpop.f32.mrb[0].mxu0
  %611 = vmatprep.mubr.f32.mxu0 0.0
  %612 = vmatmul.mubr.f32.gmra.mrb[0].mxu0 %v537
  %v613 = vpop.f32.mrb[0].mxu0
  %v614 = vadd.f32 %v530, %v613
  %v615 = vpop.f32.mrb[0].mxu0
  %616 = vdwg.mxu0
  %s617 = scalar_lea.vmem %s2, 8
  %v618 = vld [vmem:[%s617] sm:$0xf]
  %v620 = vsel %vm447, %v27, 0
  %v623 = vsel %vm447, %v28, 0
  %v626 = vsel %vm454, %v618, 0
  %628 = vmatprep.subr.mxu0 0.0
  %629 = vmatpush1.msra.mxu0 %v626
  %630 = vmatprep.subr.mxu0 0.0
  %631 = vmatpush1.msra.mxu0 0.0
  %632 = vmatprep.subr.mxu0 0.0
  %633 = vmatpush1.msra.mxu0 0.0
  %634 = vmatprep.subr.mxu0 0.0
  %635 = vmatpush1.msra.mxu0 0.0
  %636 = vmatprep.subr.mxu0 0.0
  %637 = vmatpush1.msra.mxu0 0.0
  %638 = vmatprep.subr.mxu0 0.0
  %639 = vmatpush1.msra.mxu0 0.0
  %640 = vmatprep.subr.mxu0 0.0
  %641 = vmatpush1.msra.mxu0 0.0
  %642 = vmatprep.subr.mxu0 0.0
  %643 = vmatpush1.msra.mxu0 0.0
  %644 = vmatprep.subr.mxu0 0.0
  %645 = vmatpush1.msra.mxu0 0.0
  %646 = vmatprep.subr.mxu0 0.0
  %647 = vmatpush1.msra.mxu0 0.0
  %648 = vmatprep.subr.mxu0 0.0
  %649 = vmatpush1.msra.mxu0 0.0
  %650 = vmatprep.subr.mxu0 0.0
  %651 = vmatpush1.msra.mxu0 0.0
  %652 = vmatprep.subr.mxu0 0.0
  %653 = vmatpush1.msra.mxu0 0.0
  %654 = vmatprep.subr.mxu0 0.0
  %655 = vmatpush1.msra.mxu0 0.0
  %656 = vmatprep.subr.mxu0 0.0
  %657 = vmatpush1.msra.mxu0 0.0
  %658 = vmatprep.subr.mxu0 0.0
  %659 = vmatpush1.msra.mxu0 0.0
  %660 = vmatprep.subr.mxu0 0.0
  %661 = vmatpush1.msra.mxu0 0.0
  %662 = vmatprep.subr.mxu0 0.0
  %663 = vmatpush1.msra.mxu0 0.0
  %664 = vmatprep.subr.mxu0 0.0
  %665 = vmatpush1.msra.mxu0 0.0
  %666 = vmatprep.subr.mxu0 0.0
  %667 = vmatpush1.msra.mxu0 0.0
  %668 = vmatprep.subr.mxu0 0.0
  %669 = vmatpush1.msra.mxu0 0.0
  %670 = vmatprep.subr.mxu0 0.0
  %671 = vmatpush1.msra.mxu0 0.0
  %672 = vmatprep.subr.mxu0 0.0
  %673 = vmatpush1.msra.mxu0 0.0
  %674 = vmatprep.subr.mxu0 0.0
  %675 = vmatpush1.msra.mxu0 0.0
  %676 = vmatprep.subr.mxu0 0.0
  %677 = vmatpush1.msra.mxu0 0.0
  %678 = vmatprep.subr.mxu0 0.0
  %679 = vmatpush1.msra.mxu0 0.0
  %680 = vmatprep.subr.mxu0 0.0
  %681 = vmatpush1.msra.mxu0 0.0
  %682 = vmatprep.subr.mxu0 0.0
  %683 = vmatpush1.msra.mxu0 0.0
  %684 = vmatprep.subr.mxu0 0.0
  %685 = vmatpush1.msra.mxu0 0.0
  %686 = vmatprep.subr.mxu0 0.0
  %687 = vmatpush1.msra.mxu0 0.0
  %688 = vmatprep.subr.mxu0 0.0
  %689 = vmatpush1.msra.mxu0 0.0
  %690 = vmatprep.subr.mxu0 0.0
  %691 = vmatpush1.msra.mxu0 0.0
  %692 = vmatprep.mubr.f32.mxu0 0.0
  %693 = vmatmul.mubr.f32.gmra.mrb[0].mxu0 %v620
  %v694 = vpop.f32.mrb[0].mxu0
  %v695 = vadd.f32 0.0, %v694
  %v696 = vpop.f32.mrb[0].mxu0
  %697 = vmatprep.mubr.f32.mxu0 0.0
  %698 = vmatmul.mubr.f32.gmra.mrb[0].mxu0 %v623
  %v699 = vpop.f32.mrb[0].mxu0
  %v700 = vadd.f32 0.0, %v699
  %v701 = vpop.f32.mrb[0].mxu0
  %702 = vdwg.mxu0
  %v703 = vadd.f32 %v609, %v695
  %v704 = vadd.f32 %v614, %v700
  %v705 = vlaneseq
  %v706 = vshrl.u32 %v705, 7
  %v707 = vsub.s32 0, %v706
  %v708 = vrot.slane %v29, %v707
  %v709 = vadd.f32 %v703, %v708
  %v710 = vadd.f32 %v704, %v708
  %v711 = vtanh.pop %v709
  %v712 = vtanh.pop %v710
  %v713 = vld [vmem:[%s3] sm:$0xff]
  %v714 = vld [vmem:[%s3 + $0x8] sm:$0xff]
  %v715 = vld [vmem:[%s3 + $0x10] sm:$0xff]
  %v716 = vld [vmem:[%s3 + $0x18] sm:$0xff]
  %v717 = vlaneseq
  %v718 = vshrl.u32 %v717, 7
  %v719 = vsub.s32 2, %v718
  %v720 = vrot.slane %v29, %v719
  %vm721 = vcmask 261120
  %v723 = vsel %vm721, %v711, 0
  %v726 = vsel %vm721, %v712, 0
  %728 = vmatprep.subr.mxu0 0.0
  %729 = vmatpush1.msra.mxu0 %v713
  %730 = vmatprep.subr.mxu0 0.0
  %731 = vmatpush1.msra.mxu0 %v714
  %732 = vmatprep.subr.mxu0 0.0
  %733 = vmatpush1.msra.mxu0 %v715
  %734 = vmatprep.subr.mxu0 0.0
  %735 = vmatpush1.msra.mxu0 %v716
  %736 = vmatprep.subr.mxu0 0.0
  %737 = vmatpush1.msra.mxu0 0.0
  %738 = vmatprep.subr.mxu0 0.0
  %739 = vmatpush1.msra.mxu0 0.0
  %740 = vmatprep.subr.mxu0 0.0
  %741 = vmatpush1.msra.mxu0 0.0
  %742 = vmatprep.subr.mxu0 0.0
  %743 = vmatpush1.msra.mxu0 0.0
  %744 = vmatprep.subr.mxu0 0.0
  %745 = vmatpush1.msra.mxu0 0.0
  %746 = vmatprep.subr.mxu0 0.0
  %747 = vmatpush1.msra.mxu0 0.0
  %748 = vmatprep.subr.mxu0 0.0
  %749 = vmatpush1.msra.mxu0 0.0
  %750 = vmatprep.subr.mxu0 0.0
  %751 = vmatpush1.msra.mxu0 0.0
  %752 = vmatprep.subr.mxu0 0.0
  %753 = vmatpush1.msra.mxu0 0.0
  %754 = vmatprep.subr.mxu0 0.0
  %755 = vmatpush1.msra.mxu0 0.0
  %756 = vmatprep.subr.mxu0 0.0
  %757 = vmatpush1.msra.mxu0 0.0
  %758 = vmatprep.subr.mxu0 0.0
  %759 = vmatpush1.msra.mxu0 0.0
  %760 = vmatprep.subr.mxu0 0.0
  %761 = vmatpush1.msra.mxu0 0.0
  %762 = vmatprep.subr.mxu0 0.0
  %763 = vmatpush1.msra.mxu0 0.0
  %764 = vmatprep.subr.mxu0 0.0
  %765 = vmatpush1.msra.mxu0 0.0
  %766 = vmatprep.subr.mxu0 0.0
  %767 = vmatpush1.msra.mxu0 0.0
  %768 = vmatprep.subr.mxu0 0.0
  %769 = vmatpush1.msra.mxu0 0.0
  %770 = vmatprep.subr.mxu0 0.0
  %771 = vmatpush1.msra.mxu0 0.0
  %772 = vmatprep.subr.mxu0 0.0
  %773 = vmatpush1.msra.mxu0 0.0
  %774 = vmatprep.subr.mxu0 0.0
  %775 = vmatpush1.msra.mxu0 0.0
  %776 = vmatprep.subr.mxu0 0.0
  %777 = vmatpush1.msra.mxu0 0.0
  %778 = vmatprep.subr.mxu0 0.0
  %779 = vmatpush1.msra.mxu0 0.0
  %780 = vmatprep.subr.mxu0 0.0
  %781 = vmatpush1.msra.mxu0 0.0
  %782 = vmatprep.subr.mxu0 0.0
  %783 = vmatpush1.msra.mxu0 0.0
  %784 = vmatprep.subr.mxu0 0.0
  %785 = vmatpush1.msra.mxu0 0.0
  %786 = vmatprep.subr.mxu0 0.0
  %787 = vmatpush1.msra.mxu0 0.0
  %788 = vmatprep.subr.mxu0 0.0
  %789 = vmatpush1.msra.mxu0 0.0
  %790 = vmatprep.subr.mxu0 0.0
  %791 = vmatpush1.msra.mxu0 0.0
  %792 = vmatprep.mubr.f32.mxu0 0.0
  %793 = vmatmul.mubr.f32.gmra.mrb[0].mxu0 %v723
  %v794 = vpop.f32.mrb[0].mxu0
  %v795 = vadd.f32 %v720, %v794
  %v796 = vpop.f32.mrb[0].mxu0
  %797 = vmatprep.mubr.f32.mxu0 0.0
  %798 = vmatmul.mubr.f32.gmra.mrb[0].mxu0 %v726
  %v799 = vpop.f32.mrb[0].mxu0
  %v800 = vadd.f32 %v720, %v799
  %v801 = vpop.f32.mrb[0].mxu0
  %802 = vdwg.mxu0
  %v803 = vtanh.pop %v795
  %v804 = vtanh.pop %v800
  %v805 = vld [vmem:[%s4] sm:$0xff]
  %v806 = vld [vmem:[%s4 + $0x8] sm:$0xff]
  %v807 = vld [vmem:[%s4 + $0x10] sm:$0xff]
  %v808 = vld [vmem:[%s4 + $0x18] sm:$0xff]
  %s809 = sld [smem:[#allocation2]]
  %v810 = vsel %vm447, %v27, 0.0
  %811 = vadd.xlane.f32.xlu0 %v810
  %v812 = vpop.xlane.xlu0 %811
  %v813 = vsel %vm447, %v28, 0.0
  %814 = vadd.xlane.f32.xlu0 %v813
  %v815 = vpop.xlane.xlu0 %814
  %v816 = vstv %s809
  %v817 = vadd.f32 %v812, %v816
  %v818 = vadd.f32 %v815, %v816
  %v819 = vtanh.pop %v817
  %v820 = vtanh.pop %v818
  %v821 = vlaneseq
  %v822 = vshrl.u32 %v821, 7
  %v823 = vsub.s32 4, %v822
  %v824 = vrot.slane %v29, %v823
  %v825 = vmul.f32 %v819, %v824
  %v826 = vmul.f32 %v820, %v824
  %v827 = vlaneseq
  %v828 = vshrl.u32 %v827, 7
  %v829 = vsub.s32 1, %v828
  %v830 = vrot.slane %v29, %v829
  %v831 = vadd.f32 %v825, %v830
  %v832 = vadd.f32 %v826, %v830
  %v833 = vtanh.pop %v831
  %v834 = vtanh.pop %v832
  %s835 = scalar_lea.vmem %s3, 32
  %v836 = vld [vmem:[%s835] sm:$0xff]
  %v837 = vld [vmem:[%s835 + $0x8] sm:$0xff]
  %v838 = vld [vmem:[%s835 + $0x10] sm:$0xff]
  %v839 = vld [vmem:[%s835 + $0x18] sm:$0xff]
  %v840 = vlaneseq
  %v841 = vshrl.u32 %v840, 7
  %v842 = vsub.s32 3, %v841
  %v843 = vrot.slane %v29, %v842
  %v845 = vsel %vm721, %v833, 0
  %v848 = vsel %vm721, %v834, 0
  %850 = vmatprep.subr.mxu0 0.0
  %851 = vmatpush1.msra.mxu0 %v836
  %852 = vmatprep.subr.mxu0 0.0
  %853 = vmatpush1.msra.mxu0 %v837
  %854 = vmatprep.subr.mxu0 0.0
  %855 = vmatpush1.msra.mxu0 %v838
  %856 = vmatprep.subr.mxu0 0.0
  %857 = vmatpush1.msra.mxu0 %v839
  %858 = vmatprep.subr.mxu0 0.0
  %859 = vmatpush1.msra.mxu0 0.0
  %860 = vmatprep.subr.mxu0 0.0
  %861 = vmatpush1.msra.mxu0 0.0
  %862 = vmatprep.subr.mxu0 0.0
  %863 = vmatpush1.msra.mxu0 0.0
  %864 = vmatprep.subr.mxu0 0.0
  %865 = vmatpush1.msra.mxu0 0.0
  %866 = vmatprep.subr.mxu0 0.0
  %867 = vmatpush1.msra.mxu0 0.0
  %868 = vmatprep.subr.mxu0 0.0
  %869 = vmatpush1.msra.mxu0 0.0
  %870 = vmatprep.subr.mxu0 0.0
  %871 = vmatpush1.msra.mxu0 0.0
  %872 = vmatprep.subr.mxu0 0.0
  %873 = vmatpush1.msra.mxu0 0.0
  %874 = vmatprep.subr.mxu0 0.0
  %875 = vmatpush1.msra.mxu0 0.0
  %876 = vmatprep.subr.mxu0 0.0
  %877 = vmatpush1.msra.mxu0 0.0
  %878 = vmatprep.subr.mxu0 0.0
  %879 = vmatpush1.msra.mxu0 0.0
  %880 = vmatprep.subr.mxu0 0.0
  %881 = vmatpush1.msra.mxu0 0.0
  %882 = vmatprep.subr.mxu0 0.0
  %883 = vmatpush1.msra.mxu0 0.0
  %884 = vmatprep.subr.mxu0 0.0
  %885 = vmatpush1.msra.mxu0 0.0
  %886 = vmatprep.subr.mxu0 0.0
  %887 = vmatpush1.msra.mxu0 0.0
  %888 = vmatprep.subr.mxu0 0.0
  %889 = vmatpush1.msra.mxu0 0.0
  %890 = vmatprep.subr.mxu0 0.0
  %891 = vmatpush1.msra.mxu0 0.0
  %892 = vmatprep.subr.mxu0 0.0
  %893 = vmatpush1.msra.mxu0 0.0
  %894 = vmatprep.subr.mxu0 0.0
  %895 = vmatpush1.msra.mxu0 0.0
  %896 = vmatprep.subr.mxu0 0.0
  %897 = vmatpush1.msra.mxu0 0.0
  %898 = vmatprep.subr.mxu0 0.0
  %899 = vmatpush1.msra.mxu0 0.0
  %900 = vmatprep.subr.mxu0 0.0
  %901 = vmatpush1.msra.mxu0 0.0
  %902 = vmatprep.subr.mxu0 0.0
  %903 = vmatpush1.msra.mxu0 0.0
  %904 = vmatprep.subr.mxu0 0.0
  %905 = vmatpush1.msra.mxu0 0.0
  %906 = vmatprep.subr.mxu0 0.0
  %907 = vmatpush1.msra.mxu0 0.0
  %908 = vmatprep.subr.mxu0 0.0
  %909 = vmatpush1.msra.mxu0 0.0
  %910 = vmatprep.subr.mxu0 0.0
  %911 = vmatpush1.msra.mxu0 0.0
  %912 = vmatprep.subr.mxu0 0.0
  %913 = vmatpush1.msra.mxu0 0.0
  %914 = vmatprep.mubr.f32.mxu0 0.0
  %915 = vmatmul.mubr.f32.gmra.mrb[0].mxu0 %v845
  %v916 = vpop.f32.mrb[0].mxu0
  %v917 = vadd.f32 %v843, %v916
  %v918 = vpop.f32.mrb[0].mxu0
  %919 = vmatprep.mubr.f32.mxu0 0.0
  %920 = vmatmul.mubr.f32.gmra.mrb[0].mxu0 %v848
  %v921 = vpop.f32.mrb[0].mxu0
  %v922 = vadd.f32 %v843, %v921
  %v923 = vpop.f32.mrb[0].mxu0
  %924 = vdwg.mxu0
  %v925 = vtanh.pop %v917
  %v926 = vtanh.pop %v922
  %s927 = scalar_lea.vmem %s4, 32
  %v928 = vld [vmem:[%s927] sm:$0xff]
  %v929 = vld [vmem:[%s927 + $0x8] sm:$0xff]
  %v930 = vld [vmem:[%s927 + $0x10] sm:$0xff]
  %v931 = vld [vmem:[%s927 + $0x18] sm:$0xff]
  %v933 = vsel %vm721, %v925, 0
  %v936 = vsel %vm721, %v926, 0
  %938 = vmatprep.subr.mxu0 0.0
  %939 = vmatpush1.msra.mxu0 %v928
  %940 = vmatprep.subr.mxu0 0.0
  %941 = vmatpush1.msra.mxu0 %v929
  %942 = vmatprep.subr.mxu0 0.0
  %943 = vmatpush1.msra.mxu0 %v930
  %944 = vmatprep.subr.mxu0 0.0
  %945 = vmatpush1.msra.mxu0 %v931
  %946 = vmatprep.subr.mxu0 0.0
  %947 = vmatpush1.msra.mxu0 0.0
  %948 = vmatprep.subr.mxu0 0.0
  %949 = vmatpush1.msra.mxu0 0.0
  %950 = vmatprep.subr.mxu0 0.0
  %951 = vmatpush1.msra.mxu0 0.0
  %952 = vmatprep.subr.mxu0 0.0
  %953 = vmatpush1.msra.mxu0 0.0
  %954 = vmatprep.subr.mxu0 0.0
  %955 = vmatpush1.msra.mxu0 0.0
  %956 = vmatprep.subr.mxu0 0.0
  %957 = vmatpush1.msra.mxu0 0.0
  %958 = vmatprep.subr.mxu0 0.0
  %959 = vmatpush1.msra.mxu0 0.0
  %960 = vmatprep.subr.mxu0 0.0
  %961 = vmatpush1.msra.mxu0 0.0
  %962 = vmatprep.subr.mxu0 0.0
  %963 = vmatpush1.msra.mxu0 0.0
  %964 = vmatprep.subr.mxu0 0.0
  %965 = vmatpush1.msra.mxu0 0.0
  %966 = vmatprep.subr.mxu0 0.0
  %967 = vmatpush1.msra.mxu0 0.0
  %968 = vmatprep.subr.mxu0 0.0
  %969 = vmatpush1.msra.mxu0 0.0
  %970 = vmatprep.subr.mxu0 0.0
  %971 = vmatpush1.msra.mxu0 0.0
  %972 = vmatprep.subr.mxu0 0.0
  %973 = vmatpush1.msra.mxu0 0.0
  %974 = vmatprep.subr.mxu0 0.0
  %975 = vmatpush1.msra.mxu0 0.0
  %976 = vmatprep.subr.mxu0 0.0
  %977 = vmatpush1.msra.mxu0 0.0
  %978 = vmatprep.subr.mxu0 0.0
  %979 = vmatpush1.msra.mxu0 0.0
  %980 = vmatprep.subr.mxu0 0.0
  %981 = vmatpush1.msra.mxu0 0.0
  %982 = vmatprep.subr.mxu0 0.0
  %983 = vmatpush1.msra.mxu0 0.0
  %984 = vmatprep.subr.mxu0 0.0
  %985 = vmatpush1.msra.mxu0 0.0
  %986 = vmatprep.subr.mxu0 0.0
  %987 = vmatpush1.msra.mxu0 0.0
  %988 = vmatprep.subr.mxu0 0.0
  %989 = vmatpush1.msra.mxu0 0.0
  %990 = vmatprep.subr.mxu0 0.0
  %991 = vmatpush1.msra.mxu0 0.0
  %992 = vmatprep.subr.mxu0 0.0
  %993 = vmatpush1.msra.mxu0 0.0
  %994 = vmatprep.subr.mxu0 0.0
  %995 = vmatpush1.msra.mxu0 0.0
  %996 = vmatprep.subr.mxu0 0.0
  %997 = vmatpush1.msra.mxu0 0.0
  %998 = vmatprep.subr.mxu0 0.0
  %999 = vmatpush1.msra.mxu0 0.0
  %1000 = vmatprep.subr.mxu0 0.0
  %1001 = vmatpush1.msra.mxu0 0.0
  %1002 = vmatprep.mubr.f32.mxu0 0.0
  %1003 = vmatmul.mubr.f32.gmra.mrb[0].mxu0 %v933
  %v1004 = vpop.f32.mrb[0].mxu0
  %v1005 = vadd.f32 0.0, %v1004
  %v1006 = vpop.f32.mrb[0].mxu0
  %1007 = vmatprep.mubr.f32.mxu0 0.0
  %1008 = vmatmul.mubr.f32.gmra.mrb[0].mxu0 %v936
  %v1009 = vpop.f32.mrb[0].mxu0
  %v1010 = vadd.f32 0.0, %v1009
  %v1011 = vpop.f32.mrb[0].mxu0
  %1012 = vdwg.mxu0
  %v1014 = vsel %vm721, %v803, 0
  %v1017 = vsel %vm721, %v804, 0
  %1019 = vmatprep.subr.mxu0 0.0
  %1020 = vmatpush1.msra.mxu0 %v805
  %1021 = vmatprep.subr.mxu0 0.0
  %1022 = vmatpush1.msra.mxu0 %v806
  %1023 = vmatprep.subr.mxu0 0.0
  %1024 = vmatpush1.msra.mxu0 %v807
  %1025 = vmatprep.subr.mxu0 0.0
  %1026 = vmatpush1.msra.mxu0 %v808
  %1027 = vmatprep.subr.mxu0 0.0
  %1028 = vmatpush1.msra.mxu0 0.0
  %1029 = vmatprep.subr.mxu0 0.0
  %1030 = vmatpush1.msra.mxu0 0.0
  %1031 = vmatprep.subr.mxu0 0.0
  %1032 = vmatpush1.msra.mxu0 0.0
  %1033 = vmatprep.subr.mxu0 0.0
  %1034 = vmatpush1.msra.mxu0 0.0
  %1035 = vmatprep.subr.mxu0 0.0
  %1036 = vmatpush1.msra.mxu0 0.0
  %1037 = vmatprep.subr.mxu0 0.0
  %1038 = vmatpush1.msra.mxu0 0.0
  %1039 = vmatprep.subr.mxu0 0.0
  %1040 = vmatpush1.msra.mxu0 0.0
  %1041 = vmatprep.subr.mxu0 0.0
  %1042 = vmatpush1.msra.mxu0 0.0
  %1043 = vmatprep.subr.mxu0 0.0
  %1044 = vmatpush1.msra.mxu0 0.0
  %1045 = vmatprep.subr.mxu0 0.0
  %1046 = vmatpush1.msra.mxu0 0.0
  %1047 = vmatprep.subr.mxu0 0.0
  %1048 = vmatpush1.msra.mxu0 0.0
  %1049 = vmatprep.subr.mxu0 0.0
  %1050 = vmatpush1.msra.mxu0 0.0
  %1051 = vmatprep.subr.mxu0 0.0
  %1052 = vmatpush1.msra.mxu0 0.0
  %1053 = vmatprep.subr.mxu0 0.0
  %1054 = vmatpush1.msra.mxu0 0.0
  %1055 = vmatprep.subr.mxu0 0.0
  %1056 = vmatpush1.msra.mxu0 0.0
  %1057 = vmatprep.subr.mxu0 0.0
  %1058 = vmatpush1.msra.mxu0 0.0
  %1059 = vmatprep.subr.mxu0 0.0
  %1060 = vmatpush1.msra.mxu0 0.0
  %1061 = vmatprep.subr.mxu0 0.0
  %1062 = vmatpush1.msra.mxu0 0.0
  %1063 = vmatprep.subr.mxu0 0.0
  %1064 = vmatpush1.msra.mxu0 0.0
  %1065 = vmatprep.subr.mxu0 0.0
  %1066 = vmatpush1.msra.mxu0 0.0
  %1067 = vmatprep.subr.mxu0 0.0
  %1068 = vmatpush1.msra.mxu0 0.0
  %1069 = vmatprep.subr.mxu0 0.0
  %1070 = vmatpush1.msra.mxu0 0.0
  %1071 = vmatprep.subr.mxu0 0.0
  %1072 = vmatpush1.msra.mxu0 0.0
  %1073 = vmatprep.subr.mxu0 0.0
  %1074 = vmatpush1.msra.mxu0 0.0
  %1075 = vmatprep.subr.mxu0 0.0
  %1076 = vmatpush1.msra.mxu0 0.0
  %1077 = vmatprep.subr.mxu0 0.0
  %1078 = vmatpush1.msra.mxu0 0.0
  %1079 = vmatprep.subr.mxu0 0.0
  %1080 = vmatpush1.msra.mxu0 0.0
  %1081 = vmatprep.subr.mxu0 0.0
  %1082 = vmatpush1.msra.mxu0 0.0
  %1083 = vmatprep.mubr.f32.mxu0 0.0
  %1084 = vmatmul.mubr.f32.gmra.mrb[0].mxu0 %v1014
  %v1085 = vpop.f32.mrb[0].mxu0
  %v1086 = vadd.f32 %v1005, %v1085
  %v1087 = vpop.f32.mrb[0].mxu0
  %1088 = vmatprep.mubr.f32.mxu0 0.0
  %1089 = vmatmul.mubr.f32.gmra.mrb[0].mxu0 %v1017
  %v1090 = vpop.f32.mrb[0].mxu0
  %v1091 = vadd.f32 %v1010, %v1090
  %v1092 = vpop.f32.mrb[0].mxu0
  %1093 = vdwg.mxu0
  %v1094 = vld [vmem:[%s6] sm:$0x1]
  %v1096 = vlaneseq
  %v1097 = vshrl.u32 %v1096, 7
  %v1098 = vsub.s32 0, %v1097
  %v1099 = vrot.slane %v1094, %v1098
  %v1101 = vadd.f32 %v1086, %v1099
  %v1102 = vadd.f32 %v1091, %v1099
  %1103 = vst.msk [vmem:[%s7] sm:$0xff] %vm447, %v1101
  %1104 = vst.msk [vmem:[%s7 + $0x8] sm:$0xff] %vm447, %v1102
  // Predicated region
  $region30: #{tpu_custom_call.1} parent=0 // pred_check
    _
  $region31: #{tpu_custom_call.1} parent=0 // pred_check_branch
    %1106 = sbr.rel (0) target = $region33
  $region32: #{tpu_custom_call.1} parent=0 // pred_region
    _
  $region33: #{tpu_custom_call.1} parent=0 // pred_fallthru
    _
  // Predicated region
  $region34: #{tpu_custom_call.1} parent=0 // pred_check
    _
  $region35: #{tpu_custom_call.1} parent=0 // pred_check_branch
    %1108 = sbr.rel (0) target = $region37
  $region36: #{tpu_custom_call.1} parent=0 // pred_region
    _
  $region37: #{tpu_custom_call.1} parent=0 // pred_fallthru
    _

</llo_original>
